<compile_context>
chip_gen: v7x
topology: tpu7x:2x2x1
jax: 0.10.0
libtpu: 0.0.40
codegen_flags: <defaults>
</compile_context>

<pallas_src>
import jax
import jax.numpy as jnp
from jax.experimental import pallas as pl
from jax.experimental.pallas import tpu as pltpu


def _mlp_kernel(xT_ref, w1_ref, b1_ref, w2_ref, b2_ref, oT_ref):
    # xT: (F, TN)  w1: (HP, F)  b1: (HP, 1)  w2: (O, HP)  b2: (O, 1)  out: (O, TN)
    xT = xT_ref[...]
    h = jnp.dot(w1_ref[...], xT, preferred_element_type=jnp.float32)   # (HP, TN)
    h = jnp.maximum(h + b1_ref[...], 0.0)                              # bias + ReLU
    y = jnp.dot(w2_ref[...], h, preferred_element_type=jnp.float32)    # (O, TN)
    oT_ref[...] = (y + b2_ref[...]).astype(oT_ref.dtype)


def net_forward(x, w1, b1, w2, b2, *, tile_n=256):
    """Forward pass of Net.

    x : (N, F) float32, row-major (batch, feature)
    w1: (H, F), b1: (H,)   -- PyTorch nn.Linear(n_feature, n_hidden) convention
    w2: (O, H), b2: (O,)   -- PyTorch nn.Linear(n_hidden, n_output) convention
    Returns logits (N, O) float32.
    """
    N, F = x.shape
    H = w1.shape[0]
    O = w2.shape[0]

    # Pad hidden dim to a multiple of 8 (sublane alignment for the (H, TN)
    # intermediate).  Zero padding is exact: padded hidden units are
    # relu(0 + 0) = 0 and the matching w2 columns are 0.
    HP = max(8, ((H + 7) // 8) * 8)
    w1p = jnp.zeros((HP, F), x.dtype).at[:H, :].set(w1)
    b1p = jnp.zeros((HP, 1), x.dtype).at[:H, 0].set(b1)
    w2p = jnp.zeros((O, HP), x.dtype).at[:, :H].set(w2)
    b2p = b2.reshape(O, 1).astype(x.dtype)

    # Pad the batch to a multiple of tile_n and put it on the lane axis.
    NP = ((N + tile_n - 1) // tile_n) * tile_n
    xT = jnp.zeros((F, NP), x.dtype).at[:, :N].set(x.T)

    grid = (NP // tile_n,)

    yT = pl.pallas_call(
        _mlp_kernel,
        out_shape=jax.ShapeDtypeStruct((O, NP), x.dtype),
        grid=grid,
        in_specs=[
            # Batch-tiled input: lane dim = tile_n (multiple of 128), sublane = F.
            pl.BlockSpec((F, tile_n), lambda i: (0, i)),
            # Weights / biases: constant index maps -> VMEM-resident, no re-DMA.
            pl.BlockSpec((HP, F), lambda i: (0, 0)),
            pl.BlockSpec((HP, 1), lambda i: (0, 0)),
            pl.BlockSpec((O, HP), lambda i: (0, 0)),
            pl.BlockSpec((O, 1), lambda i: (0, 0)),
        ],
        # Lane-dense output: (O, tile_n) -> unmasked full-lane stores.
        out_specs=pl.BlockSpec((O, tile_n), lambda i: (0, i)),
        compiler_params=pltpu.CompilerParams(
            dimension_semantics=("parallel",),  # shards across v7x's 2 TCs
        ),
    )(xT, w1p, b1p, w2p, b2p)

    # Back to PyTorch layout (N, O); drop batch padding.
    return yT[:, :N].T


def init_params(key, n_feature, n_hidden, n_output):
    """Deterministic init mimicking torch.nn.Linear (uniform +-1/sqrt(fan_in)),
    in PyTorch weight convention: w (out_features, in_features), b (out_features,)."""
    k1, k2, k3, k4 = jax.random.split(key, 4)
    bound1 = 1.0 / jnp.sqrt(jnp.float32(n_feature))
    bound2 = 1.0 / jnp.sqrt(jnp.float32(n_hidden))
    w1 = jax.random.uniform(k1, (n_hidden, n_feature), jnp.float32, -bound1, bound1)
    b1 = jax.random.uniform(k2, (n_hidden,), jnp.float32, -bound1, bound1)
    w2 = jax.random.uniform(k3, (n_output, n_hidden), jnp.float32, -bound2, bound2)
    b2 = jax.random.uniform(k4, (n_output,), jnp.float32, -bound2, bound2)
    return w1, b1, w2, b2


if __name__ == "__main__":
    # Same structure as the classification demo: 2 features -> 10 hidden -> 2 classes.
    n_feature, n_hidden, n_output = 2, 10, 2
    batch = 1024          # batch many rows per call to amortize launch/DMA overhead
    tile_n = 256          # rows per grid step (lane-dense, multiple of 128)

    key = jax.random.PRNGKey(0)
    kx0, kx1, kp = jax.random.split(key, 3)

    # Two synthetic clusters like torch.normal(+-2, 1) in the original script.
    half = batch // 2
    x0 = 2.0 + jax.random.normal(kx0, (half, n_feature), jnp.float32)
    x1 = -2.0 + jax.random.normal(kx1, (half, n_feature), jnp.float32)
    x = jnp.concatenate([x0, x1], axis=0)

    w1, b1, w2, b2 = init_params(kp, n_feature, n_hidden, n_output)

    out = net_forward(x, w1, b1, w2, b2, tile_n=tile_n)
    out = jax.block_until_ready(out)

    # Pure-JAX reference (PyTorch semantics: x @ W^T + b).
    ref = jnp.maximum(x @ w1.T + b1, 0.0) @ w2.T + b2
    assert out.shape == (batch, n_output)
    assert jnp.allclose(out, ref, atol=1e-5, rtol=1e-5)

    print("KERNEL_OK")
</pallas_src>

<mosaic_0001>
module attributes {stable_mosaic.version = 11 : i64} {
  func.func @_mlp_kernel(%arg0: i32, %arg1: memref<2x256xf32, #tpu.memory_space<vmem>>, %arg2: memref<16x2xf32, #tpu.memory_space<vmem>>, %arg3: memref<16x1xf32, #tpu.memory_space<vmem>>, %arg4: memref<2x16xf32, #tpu.memory_space<vmem>>, %arg5: memref<2x1xf32, #tpu.memory_space<vmem>>, %arg6: memref<2x256xf32, #tpu.memory_space<vmem>>) attributes {dimension_semantics = [#tpu.dimension_semantics<parallel>], iteration_bounds = array<i64: 4>, scalar_prefetch = 0 : i64, scratch_operands = 0 : i64, tpu.core_type = #tpu.core_type<tc>, window_params = [{transform_indices = @transform_0, window_bounds = array<i64: 2, 256>}, {pipeline_mode = #tpu.pipeline_mode<synchronous>, transform_indices = @transform_1, window_bounds = array<i64: 16, 2>}, {pipeline_mode = #tpu.pipeline_mode<synchronous>, transform_indices = @transform_2, window_bounds = array<i64: 16, 1>}, {pipeline_mode = #tpu.pipeline_mode<synchronous>, transform_indices = @transform_3, window_bounds = array<i64: 2, 16>}, {pipeline_mode = #tpu.pipeline_mode<synchronous>, transform_indices = @transform_4, window_bounds = array<i64: 2, 1>}, {transform_indices = @transform_5, window_bounds = array<i64: 2, 256>}]} {
    %c0 = arith.constant 0 : index
    %c0_0 = arith.constant 0 : index
    %0 = vector.load %arg1[%c0, %c0_0] : memref<2x256xf32, #tpu.memory_space<vmem>>, vector<2x256xf32>
    %c0_1 = arith.constant 0 : index
    %c0_2 = arith.constant 0 : index
    %1 = vector.load %arg2[%c0_1, %c0_2] : memref<16x2xf32, #tpu.memory_space<vmem>>, vector<16x2xf32>
    %cst = arith.constant dense<0.000000e+00> : vector<16x256xf32>
    %2 = tpu.matmul %1, %0, %cst {dimension_numbers = #tpu.dot_dimension_numbers<[1], [0], [0], [1], [0, 0, 1, 1], [], []>} : vector<16x2xf32>, vector<2x256xf32>, vector<16x256xf32> -> vector<16x256xf32>
    %c0_3 = arith.constant 0 : index
    %c0_4 = arith.constant 0 : index
    %3 = vector.load %arg3[%c0_3, %c0_4] : memref<16x1xf32, #tpu.memory_space<vmem>>, vector<16x1xf32>
    %4 = vector.broadcast %3 : vector<16x1xf32> to vector<16x256xf32>
    %5 = arith.addf %2, %4 : vector<16x256xf32>
    %cst_5 = arith.constant 0.000000e+00 : f32
    %6 = vector.broadcast %cst_5 : f32 to vector<16x256xf32>
    %7 = arith.maximumf %5, %6 : vector<16x256xf32>
    %c0_6 = arith.constant 0 : index
    %c0_7 = arith.constant 0 : index
    %8 = vector.load %arg4[%c0_6, %c0_7] : memref<2x16xf32, #tpu.memory_space<vmem>>, vector<2x16xf32>
    %cst_8 = arith.constant dense<0.000000e+00> : vector<2x256xf32>
    %9 = tpu.matmul %8, %7, %cst_8 {dimension_numbers = #tpu.dot_dimension_numbers<[1], [0], [0], [1], [0, 0, 1, 1], [], []>} : vector<2x16xf32>, vector<16x256xf32>, vector<2x256xf32> -> vector<2x256xf32>
    %c0_9 = arith.constant 0 : index
    %c0_10 = arith.constant 0 : index
    %10 = vector.load %arg5[%c0_9, %c0_10] : memref<2x1xf32, #tpu.memory_space<vmem>>, vector<2x1xf32>
    %11 = vector.broadcast %10 : vector<2x1xf32> to vector<2x256xf32>
    %12 = arith.addf %9, %11 : vector<2x256xf32>
    %c0_11 = arith.constant 0 : index
    %c0_12 = arith.constant 0 : index
    %13 = vector.load %arg6[%c0_11, %c0_12] : memref<2x256xf32, #tpu.memory_space<vmem>>, vector<2x256xf32>
    tpu.vector_store %arg6[%c0_11, %c0_12], %12 {strides = array<i32>} : memref<2x256xf32, #tpu.memory_space<vmem>>, vector<2x256xf32>,
    return
  }
  func.func @transform_0(%arg0: i32) -> (i32, i32) {
    %c0_i32 = arith.constant 0 : i32
    %c0_i32_0 = arith.constant 0 : i32
    return %c0_i32, %arg0 : i32, i32
  }
  func.func @transform_1(%arg0: i32) -> (i32, i32) {
    %c0_i32 = arith.constant 0 : i32
    %c0_i32_0 = arith.constant 0 : i32
    %c0_i32_1 = arith.constant 0 : i32
    return %c0_i32, %c0_i32_0 : i32, i32
  }
  func.func @transform_2(%arg0: i32) -> (i32, i32) {
    %c0_i32 = arith.constant 0 : i32
    %c0_i32_0 = arith.constant 0 : i32
    %c0_i32_1 = arith.constant 0 : i32
    return %c0_i32, %c0_i32_0 : i32, i32
  }
  func.func @transform_3(%arg0: i32) -> (i32, i32) {
    %c0_i32 = arith.constant 0 : i32
    %c0_i32_0 = arith.constant 0 : i32
    %c0_i32_1 = arith.constant 0 : i32
    return %c0_i32, %c0_i32_0 : i32, i32
  }
  func.func @transform_4(%arg0: i32) -> (i32, i32) {
    %c0_i32 = arith.constant 0 : i32
    %c0_i32_0 = arith.constant 0 : i32
    %c0_i32_1 = arith.constant 0 : i32
    return %c0_i32, %c0_i32_0 : i32, i32
  }
  func.func @transform_5(%arg0: i32) -> (i32, i32) {
    %c0_i32 = arith.constant 0 : i32
    %c0_i32_0 = arith.constant 0 : i32
    return %c0_i32, %arg0 : i32, i32
  }
}

</mosaic_0001>

<llo_original>
// kernel: tpu_custom_call.1
$region0: #{tpu_custom_call.1}
  #allocation0 [shape = 'u32[]', space=smem, size = 0x4, offset = 0x4, fixed_abs, tag = 'smem constant byte address 0x4 - core index']
  #allocation1 [shape = 'u32[144,128]{1,0:T(1,128)}', space=vmem, size = 0x12000, scoped, tag = 'internal scratch']
  %s0 = inlined_call_operand.vmem [shape: f32[2,1024], index: 0, kind: input, shape index: {}]
  %s1 = inlined_call_operand.vmem [shape: f32[16,2], index: 1, kind: input, shape index: {}]
  %s2 = inlined_call_operand.vmem [shape: f32[16,1], index: 2, kind: input, shape index: {}]
  %s3 = inlined_call_operand.vmem [shape: f32[2,16], index: 3, kind: input, shape index: {}]
  %s4 = inlined_call_operand.vmem [shape: f32[2,1], index: 4, kind: input, shape index: {}]
  %s5 = inlined_call_operand.hbm [shape: f32[2,1024], index: 5, kind: output, shape index: {}]
  %s6 = sld [smem:[#allocation0]]
  $region53: #{tpu_custom_call.1} parent=0
    _
  %s8 = ssub.s32 1, %s6
  %s9 = scalar_select 0, %s8, %s6
  $region1: #{tpu_custom_call.1} parent=0
    #allocation2 [shape = 'u8[4096]{0}', space=vmem, size = 0x1000, scoped, tag = 'output window, operand 0']
    #allocation3 [shape = 's32[2]{0}', space=sflag, size = 0x8, scoped, tag = 'scoped memory for tpu_custom_call.1']
    %10 = vsyncpa [#allocation3], 0
    %s11 = scalar_lea.sflag [#allocation3], 1
    %12 = vsyncpa %s11, 0
    loop: start=0, step=1, limit=6
    $region2: #{tpu_custom_call.1} parent=1 // loop_pre_header
      _
    $region3: #{tpu_custom_call.1} parent=1 // loop_header
      %s14 = sphi 0, %s18
      %p15 = scmp.ge.s32.totalorder %s14, 6
      %s24 = sphi 0, %s26
      %s27 = sphi 0, %s24
      %s28 = sphi 0, %s27
      %s44 = sphi 0, %s28
      %s48 = sphi 0, %s48
      %s50 = sphi 0, %s48
      %s51 = sphi 0, %s50
      %s65 = sphi 0, %s51
      %s69 = sphi 0, %s69
      %s71 = sphi 0, %s69
      %s72 = sphi 0, %s71
      %s86 = sphi 0, %s72
      %s90 = sphi 0, %s90
      %s92 = sphi 0, %s90
      %s93 = sphi 0, %s92
      %s107 = sphi 0, %s93
      %s111 = sphi 0, %s111
      %s113 = sphi 0, %s111
      %s114 = sphi 0, %s113
      %s128 = sphi 0, %s114
      %s134 = sphi 0, %s136
      %s137 = sphi 0, %s134
      %s138 = sphi 0, %s137
      %s154 = sphi 0, %s138
    $region4: #{tpu_custom_call.1} parent=1 // loop_header_branch
      %17 = sbr.rel (%p15) target = $region8
    $region5: #{tpu_custom_call.1} parent=1 // loop_body
      %s19 = ssub.s32 %s14, 1
      %s20 = ssub.s32 %s14, 2
      %s21 = sadd.s32 %s14, 1
      %s22 = ssub.s32 %s14, %s21
      %p23 = scmp.eq.s32.totalorder %s22, 0
      %s25 = sadd.s32 %s24, 1
      %s26 = scalar_select %p23, %s24, %s25
      %p29 = pneg %p23
      %p30 = scmp.eq.s32.totalorder %s14, 3
      %p31 = por %p29, %p30
      %p32 = scmp.ne.s32.totalorder %s24, %s27
      %p33 = scmp.eq.s32.totalorder %s14, 0
      %p34 = por %p32, %p33
      %p35 = scmp.ne.s32.totalorder %s24, %s27
      %p36 = scmp.eq.s32.totalorder %s19, 3
      %p37 = por %p35, %p36
      %p38 = scmp.ne.s32.totalorder %s27, %s28
      %p39 = scmp.eq.s32.totalorder %s19, 0
      %p40 = por %p38, %p39
      %p41 = scmp.ne.s32.totalorder %s27, %s28
      %p42 = scmp.eq.s32.totalorder %s20, 3
      %p43 = por %p41, %p42
      %p45 = scmp.ne.s32.totalorder %s28, %s44
      %p46 = scmp.eq.s32.totalorder %s20, 0
      %p47 = por %p45, %p46
      %s49 = sadd.s32 %s48, 1
      %p52 = scmp.eq.s32.totalorder %s14, 3
      %p53 = scmp.ne.s32.totalorder %s48, %s50
      %p54 = scmp.eq.s32.totalorder %s14, 0
      %p55 = por %p53, %p54
      %p56 = scmp.ne.s32.totalorder %s48, %s50
      %p57 = scmp.eq.s32.totalorder %s19, 3
      %p58 = por %p56, %p57
      %p59 = scmp.ne.s32.totalorder %s50, %s51
      %p60 = scmp.eq.s32.totalorder %s19, 0
      %p61 = por %p59, %p60
      %p62 = scmp.ne.s32.totalorder %s50, %s51
      %p63 = scmp.eq.s32.totalorder %s20, 3
      %p64 = por %p62, %p63
      %p66 = scmp.ne.s32.totalorder %s51, %s65
      %p67 = scmp.eq.s32.totalorder %s20, 0
      %p68 = por %p66, %p67
      %s70 = sadd.s32 %s69, 1
      %p73 = scmp.eq.s32.totalorder %s14, 3
      %p74 = scmp.ne.s32.totalorder %s69, %s71
      %p75 = scmp.eq.s32.totalorder %s14, 0
      %p76 = por %p74, %p75
      %p77 = scmp.ne.s32.totalorder %s69, %s71
      %p78 = scmp.eq.s32.totalorder %s19, 3
      %p79 = por %p77, %p78
      %p80 = scmp.ne.s32.totalorder %s71, %s72
      %p81 = scmp.eq.s32.totalorder %s19, 0
      %p82 = por %p80, %p81
      %p83 = scmp.ne.s32.totalorder %s71, %s72
      %p84 = scmp.eq.s32.totalorder %s20, 3
      %p85 = por %p83, %p84
      %p87 = scmp.ne.s32.totalorder %s72, %s86
      %p88 = scmp.eq.s32.totalorder %s20, 0
      %p89 = por %p87, %p88
      %s91 = sadd.s32 %s90, 1
      %p94 = scmp.eq.s32.totalorder %s14, 3
      %p95 = scmp.ne.s32.totalorder %s90, %s92
      %p96 = scmp.eq.s32.totalorder %s14, 0
      %p97 = por %p95, %p96
      %p98 = scmp.ne.s32.totalorder %s90, %s92
      %p99 = scmp.eq.s32.totalorder %s19, 3
      %p100 = por %p98, %p99
      %p101 = scmp.ne.s32.totalorder %s92, %s93
      %p102 = scmp.eq.s32.totalorder %s19, 0
      %p103 = por %p101, %p102
      %p104 = scmp.ne.s32.totalorder %s92, %s93
      %p105 = scmp.eq.s32.totalorder %s20, 3
      %p106 = por %p104, %p105
      %p108 = scmp.ne.s32.totalorder %s93, %s107
      %p109 = scmp.eq.s32.totalorder %s20, 0
      %p110 = por %p108, %p109
      %s112 = sadd.s32 %s111, 1
      %p115 = scmp.eq.s32.totalorder %s14, 3
      %p116 = scmp.ne.s32.totalorder %s111, %s113
      %p117 = scmp.eq.s32.totalorder %s14, 0
      %p118 = por %p116, %p117
      %p119 = scmp.ne.s32.totalorder %s111, %s113
      %p120 = scmp.eq.s32.totalorder %s19, 3
      %p121 = por %p119, %p120
      %p122 = scmp.ne.s32.totalorder %s113, %s114
      %p123 = scmp.eq.s32.totalorder %s19, 0
      %p124 = por %p122, %p123
      %p125 = scmp.ne.s32.totalorder %s113, %s114
      %p126 = scmp.eq.s32.totalorder %s20, 3
      %p127 = por %p125, %p126
      %p129 = scmp.ne.s32.totalorder %s114, %s128
      %p130 = scmp.eq.s32.totalorder %s20, 0
      %p131 = por %p129, %p130
      %s132 = ssub.s32 %s14, %s21
      %p133 = scmp.eq.s32.totalorder %s132, 0
      %s135 = sadd.s32 %s134, 1
      %s136 = scalar_select %p133, %s134, %s135
      %p139 = pneg %p133
      %p140 = scmp.eq.s32.totalorder %s14, 3
      %p141 = por %p139, %p140
      %p142 = scmp.ne.s32.totalorder %s134, %s137
      %p143 = scmp.eq.s32.totalorder %s14, 0
      %p144 = por %p142, %p143
      %p145 = scmp.ne.s32.totalorder %s134, %s137
      %p146 = scmp.eq.s32.totalorder %s19, 3
      %p147 = por %p145, %p146
      %p148 = scmp.ne.s32.totalorder %s137, %s138
      %p149 = scmp.eq.s32.totalorder %s19, 0
      %p150 = por %p148, %p149
      %p151 = scmp.ne.s32.totalorder %s137, %s138
      %p152 = scmp.eq.s32.totalorder %s20, 3
      %p153 = por %p151, %p152
      %p155 = scmp.ne.s32.totalorder %s138, %s154
      %p156 = scmp.eq.s32.totalorder %s20, 0
      %p157 = por %p155, %p156
      %p158 = scmp.le.s32.totalorder 1, %s14
      %p159 = scmp.lt.s32.totalorder %s14, 5
      %p160 = pnand %p158, %p159
      %p161 = pneg %p160
      // Predicated region
      $region9: #{tpu_custom_call.1} parent=5 // pred_check
        _
      $region10: #{tpu_custom_call.1} parent=5 // pred_check_branch
        %163 = sbr.rel (%p160) target = $region12
      $region11: #{tpu_custom_call.1} parent=5 // pred_region
        %s164 = ssub.s32 %s14, 1
        // Predicated region
        $region13: #{tpu_custom_call.1} parent=11 // pred_check
          %p165 = pneg %p61
        $region14: #{tpu_custom_call.1} parent=11 // pred_check_branch
          %167 = sbr.rel (%p165) target = $region16
        $region15: #{tpu_custom_call.1} parent=11 // pred_region
          _
        $region16: #{tpu_custom_call.1} parent=11 // pred_fallthru
          _
        // Predicated region
        $region17: #{tpu_custom_call.1} parent=11 // pred_check
          %p168 = pneg %p82
        $region18: #{tpu_custom_call.1} parent=11 // pred_check_branch
          %170 = sbr.rel (%p168) target = $region20
        $region19: #{tpu_custom_call.1} parent=11 // pred_region
          _
        $region20: #{tpu_custom_call.1} parent=11 // pred_fallthru
          _
        // Predicated region
        $region21: #{tpu_custom_call.1} parent=11 // pred_check
          %p171 = pneg %p103
        $region22: #{tpu_custom_call.1} parent=11 // pred_check_branch
          %173 = sbr.rel (%p171) target = $region24
        $region23: #{tpu_custom_call.1} parent=11 // pred_region
          _
        $region24: #{tpu_custom_call.1} parent=11 // pred_fallthru
          _
        // Predicated region
        $region25: #{tpu_custom_call.1} parent=11 // pred_check
          %p174 = pneg %p124
        $region26: #{tpu_custom_call.1} parent=11 // pred_check_branch
          %176 = sbr.rel (%p174) target = $region28
        $region27: #{tpu_custom_call.1} parent=11 // pred_region
          _
        $region28: #{tpu_custom_call.1} parent=11 // pred_fallthru
          _
      $region12: #{tpu_custom_call.1} parent=5 // pred_fallthru
        _
      %p177 = scmp.lt.s32.totalorder %s14, 4
      // Predicated region
      $region29: #{tpu_custom_call.1} parent=5 // pred_check
        %p178 = pneg %p177
      $region30: #{tpu_custom_call.1} parent=5 // pred_check_branch
        %180 = sbr.rel (%p178) target = $region32
      $region31: #{tpu_custom_call.1} parent=5 // pred_region
        // Predicated region
        $region33: #{tpu_custom_call.1} parent=31 // pred_check
          %p181 = pneg %p34
        $region34: #{tpu_custom_call.1} parent=31 // pred_check_branch
          %183 = sbr.rel (%p181) target = $region36
        $region35: #{tpu_custom_call.1} parent=31 // pred_region
          %s184 = smul.u32 2, %s14
          %p185 = scmp.lt.s32.totalorder %s184, 7
          %s186 = scalar_select %p185, %s184, 7
          %s187 = smul.addr %s186, 2
          %s188 = scalar_lea.vmem %s0, %s187
          %s189 = smul.u32 2, %s14
        $region36: #{tpu_custom_call.1} parent=31 // pred_fallthru
          _
      $region32: #{tpu_custom_call.1} parent=5 // pred_fallthru
        _
      %p190 = scmp.le.s32.totalorder 1, %s14
      %p191 = scmp.lt.s32.totalorder %s14, 5
      %p192 = pnand %p190, %p191
      %p193 = pneg %p192
      // Predicated region
      $region37: #{tpu_custom_call.1} parent=5 // pred_check
        _
      $region38: #{tpu_custom_call.1} parent=5 // pred_check_branch
        %195 = sbr.rel (%p192) target = $region40
      $region39: #{tpu_custom_call.1} parent=5 // pred_region
        %s196 = ssub.s32 %s14, 1
        %s197 = smul.u32 2, %s19
        %p198 = scmp.lt.s32.totalorder %s197, 7
        %s199 = scalar_select %p198, %s197, 7
        %s200 = smul.addr %s199, 2
        %s201 = scalar_lea.vmem %s0, %s200
        %p202 = pneg %p40
        %p203 = pneg %p37
        %p204 = pneg %p61
        %p205 = pneg %p58
        %p206 = pneg %p82
        %p207 = pneg %p79
        %p208 = pneg %p103
        %p209 = pneg %p100
        %p210 = pneg %p124
        %p211 = pneg %p121
        %p212 = pneg %p150
        %p213 = pneg %p147
        %s214 = sand.u32 %s137, 1
        %s215 = scalar_lea.sflag [#allocation3], %s214
        %s216 = sand.u32 %s137, 1
        %s217 = smul.addr %s216, 4
        %s218 = scalar_lea.vmem [#allocation2], %s217
        %s219 = smul.u32 2, %s19
        %p220 = scmp.lt.s32.totalorder %s219, 7
        %s221 = scalar_select %p220, %s219, 7
        %s222 = smul.addr %s221, 2
        %s223 = scalar_lea.vmem %s0, %s222
        %s224 = smul.u32 2, %s19
        %s225 = smul.u32 2, %s19
        %v226 = vld [vmem:[%s223] sm:$0xf]
        %v227 = vld [vmem:[%s1] sm:$0xff]
        %v228 = vld [vmem:[%s1 + $0x8] sm:$0xff]
        %v229 = vld [vmem:[%s2] sm:$0xff]
        %v230 = vld [vmem:[%s2 + $0x8] sm:$0xff]
        %232 = vset.pattern.permute.xlu0 0
        %233 = vperm.xlu0 %232, %v229
        %v234 = vpop.permute.xlu0 %233
        %237 = vset.pattern.permute.xlu0 0
        %238 = vperm.xlu0 %237, %v230
        %v239 = vpop.permute.xlu0 %238
        %v243 = vunpack.c.l.s4 1983009808
        %v244 = vunpack.c.0.s8 %v243
        %v245 = vlaneseq
        %v246 = vshrl.u32 %v245, 7
        %v247 = vsub.s32 %v244, %v246
        %v248 = vrot.slane %v226, %v247
        %v249 = vcombine.high %v248, %v248
        %vm250 = vcmask 15360
        %v252 = vsel %vm250, %v227, 0
        %v255 = vsel %vm250, %v228, 0
        %vm257 = vcmask 1041408
        %v258 = vsel %vm257, %v248, 0
        %v260 = vsel %vm257, %v249, 0
        %262 = vmatprep.subr.mxu0 %v260
        %263 = vmatpush1.msra.mxu0 %v258
        %264 = vmatprep.subr.mxu0 0.0
        %265 = vmatpush1.msra.mxu0 0.0
        %266 = vmatprep.subr.mxu0 0.0
        %267 = vmatpush1.msra.mxu0 0.0
        %268 = vmatprep.subr.mxu0 0.0
        %269 = vmatpush1.msra.mxu0 0.0
        %270 = vmatprep.subr.mxu0 0.0
        %271 = vmatpush1.msra.mxu0 0.0
        %272 = vmatprep.subr.mxu0 0.0
        %273 = vmatpush1.msra.mxu0 0.0
        %274 = vmatprep.subr.mxu0 0.0
        %275 = vmatpush1.msra.mxu0 0.0
        %276 = vmatprep.subr.mxu0 0.0
        %277 = vmatpush1.msra.mxu0 0.0
        %278 = vmatprep.subr.mxu0 0.0
        %279 = vmatpush1.msra.mxu0 0.0
        %280 = vmatprep.subr.mxu0 0.0
        %281 = vmatpush1.msra.mxu0 0.0
        %282 = vmatprep.subr.mxu0 0.0
        %283 = vmatpush1.msra.mxu0 0.0
        %284 = vmatprep.subr.mxu0 0.0
        %285 = vmatpush1.msra.mxu0 0.0
        %286 = vmatprep.subr.mxu0 0.0
        %287 = vmatpush1.msra.mxu0 0.0
        %288 = vmatprep.subr.mxu0 0.0
        %289 = vmatpush1.msra.mxu0 0.0
        %290 = vmatprep.subr.mxu0 0.0
        %291 = vmatpush1.msra.mxu0 0.0
        %292 = vmatprep.subr.mxu0 0.0
        %293 = vmatpush1.msra.mxu0 0.0
        %294 = vmatprep.subr.mxu0 0.0
        %295 = vmatpush1.msra.mxu0 0.0
        %296 = vmatprep.subr.mxu0 0.0
        %297 = vmatpush1.msra.mxu0 0.0
        %298 = vmatprep.subr.mxu0 0.0
        %299 = vmatpush1.msra.mxu0 0.0
        %300 = vmatprep.subr.mxu0 0.0
        %301 = vmatpush1.msra.mxu0 0.0
        %302 = vmatprep.subr.mxu0 0.0
        %303 = vmatpush1.msra.mxu0 0.0
        %304 = vmatprep.subr.mxu0 0.0
        %305 = vmatpush1.msra.mxu0 0.0
        %306 = vmatprep.subr.mxu0 0.0
        %307 = vmatpush1.msra.mxu0 0.0
        %308 = vmatprep.subr.mxu0 0.0
        %309 = vmatpush1.msra.mxu0 0.0
        %310 = vmatprep.subr.mxu0 0.0
        %311 = vmatpush1.msra.mxu0 0.0
        %312 = vmatprep.subr.mxu0 0.0
        %313 = vmatpush1.msra.mxu0 0.0
        %314 = vmatprep.subr.mxu0 0.0
        %315 = vmatpush1.msra.mxu0 0.0
        %316 = vmatprep.subr.mxu0 0.0
        %317 = vmatpush1.msra.mxu0 0.0
        %318 = vmatprep.subr.mxu0 0.0
        %319 = vmatpush1.msra.mxu0 0.0
        %320 = vmatprep.subr.mxu0 0.0
        %321 = vmatpush1.msra.mxu0 0.0
        %322 = vmatprep.subr.mxu0 0.0
        %323 = vmatpush1.msra.mxu0 0.0
        %324 = vmatprep.subr.mxu0 0.0
        %325 = vmatpush1.msra.mxu0 0.0
        %326 = vmatprep.mubr.f32.mxu0 0.0
        %327 = vmatmul.mubr.f32.gmra.mrb[0].mxu0 %v252
        %v328 = vpop.f32.mrb[0].mxu0
        %v329 = vadd.f32 %v234, %v328
        %v330 = vpop.f32.mrb[0].mxu0
        %v331 = vadd.f32 %v234, %v330
        %332 = vmatprep.mubr.f32.mxu0 0.0
        %333 = vmatmul.mubr.f32.gmra.mrb[0].mxu0 %v255
        %v334 = vpop.f32.mrb[0].mxu0
        %v335 = vadd.f32 %v239, %v334
        %v336 = vpop.f32.mrb[0].mxu0
        %v337 = vadd.f32 %v239, %v336
        %338 = vdwg.mxu0
        %v339 = vmax.f32 %v329, 0.0
        %v340 = vmax.f32 %v331, 0.0
        %v341 = vmax.f32 %v335, 0.0
        %v342 = vmax.f32 %v337, 0.0
        %v343 = vld [vmem:[%s3] sm:$0x3]
        %v344 = vld [vmem:[%s4] sm:$0x3]
        %346 = vset.pattern.permute.xlu0 0
        %347 = vperm.xlu0 %346, %v344
        %v348 = vpop.permute.xlu0 %347
        %vm350 = vcmask 130048
        %v352 = vsel %vm350, %v343, 0
        %354 = vmatprep.subr.mxu0 %v340
        %355 = vmatpush1.msra.mxu0 %v339
        %356 = vmatprep.subr.mxu0 %v342
        %357 = vmatpush1.msra.mxu0 %v341
        %358 = vmatprep.subr.mxu0 0.0
        %359 = vmatpush1.msra.mxu0 0.0
        %360 = vmatprep.subr.mxu0 0.0
        %361 = vmatpush1.msra.mxu0 0.0
        %362 = vmatprep.subr.mxu0 0.0
        %363 = vmatpush1.msra.mxu0 0.0
        %364 = vmatprep.subr.mxu0 0.0
        %365 = vmatpush1.msra.mxu0 0.0
        %366 = vmatprep.subr.mxu0 0.0
        %367 = vmatpush1.msra.mxu0 0.0
        %368 = vmatprep.subr.mxu0 0.0
        %369 = vmatpush1.msra.mxu0 0.0
        %370 = vmatprep.subr.mxu0 0.0
        %371 = vmatpush1.msra.mxu0 0.0
        %372 = vmatprep.subr.mxu0 0.0
        %373 = vmatpush1.msra.mxu0 0.0
        %374 = vmatprep.subr.mxu0 0.0
        %375 = vmatpush1.msra.mxu0 0.0
        %376 = vmatprep.subr.mxu0 0.0
        %377 = vmatpush1.msra.mxu0 0.0
        %378 = vmatprep.subr.mxu0 0.0
        %379 = vmatpush1.msra.mxu0 0.0
        %380 = vmatprep.subr.mxu0 0.0
        %381 = vmatpush1.msra.mxu0 0.0
        %382 = vmatprep.subr.mxu0 0.0
        %383 = vmatpush1.msra.mxu0 0.0
        %384 = vmatprep.subr.mxu0 0.0
        %385 = vmatpush1.msra.mxu0 0.0
        %386 = vmatprep.subr.mxu0 0.0
        %387 = vmatpush1.msra.mxu0 0.0
        %388 = vmatprep.subr.mxu0 0.0
        %389 = vmatpush1.msra.mxu0 0.0
        %390 = vmatprep.subr.mxu0 0.0
        %391 = vmatpush1.msra.mxu0 0.0
        %392 = vmatprep.subr.mxu0 0.0
        %393 = vmatpush1.msra.mxu0 0.0
        %394 = vmatprep.subr.mxu0 0.0
        %395 = vmatpush1.msra.mxu0 0.0
        %396 = vmatprep.subr.mxu0 0.0
        %397 = vmatpush1.msra.mxu0 0.0
        %398 = vmatprep.subr.mxu0 0.0
        %399 = vmatpush1.msra.mxu0 0.0
        %400 = vmatprep.subr.mxu0 0.0
        %401 = vmatpush1.msra.mxu0 0.0
        %402 = vmatprep.subr.mxu0 0.0
        %403 = vmatpush1.msra.mxu0 0.0
        %404 = vmatprep.subr.mxu0 0.0
        %405 = vmatpush1.msra.mxu0 0.0
        %406 = vmatprep.subr.mxu0 0.0
        %407 = vmatpush1.msra.mxu0 0.0
        %408 = vmatprep.subr.mxu0 0.0
        %409 = vmatpush1.msra.mxu0 0.0
        %410 = vmatprep.subr.mxu0 0.0
        %411 = vmatpush1.msra.mxu0 0.0
        %412 = vmatprep.subr.mxu0 0.0
        %413 = vmatpush1.msra.mxu0 0.0
        %414 = vmatprep.subr.mxu0 0.0
        %415 = vmatpush1.msra.mxu0 0.0
        %416 = vmatprep.subr.mxu0 0.0
        %417 = vmatpush1.msra.mxu0 0.0
        %418 = vmatprep.mubr.f32.mxu0 0.0
        %419 = vmatmul.mubr.f32.gmra.mrb[0].mxu0 %v352
        %v420 = vpop.f32.mrb[0].mxu0
        %v421 = vadd.f32 %v348, %v420
        %v422 = vpop.f32.mrb[0].mxu0
        %v423 = vadd.f32 %v348, %v422
        %424 = vdwg.mxu0
        %v427 = vcombine.low %v421, %v423
        %v429 = vunpack.c.l.s4 1983009808
        %v430 = vunpack.c.0.s8 %v429
        %v431 = vlaneseq
        %v432 = vshrl.u32 %v431, 7
        %v433 = vsub.s32 %v430, %v432
        %v434 = vrot.slane %v427, %v433
        %436 = vst [vmem:[%s218] sm:$0xf] %v434
        %s437 = sand.u32 %s137, 1
        %s438 = scalar_lea.sflag [#allocation3], %s437
        %s439 = sand.u32 %s137, 1
        %s440 = smul.addr %s439, 4
        %s441 = scalar_lea.vmem [#allocation2], %s440
        // Predicated region
        $region41: #{tpu_custom_call.1} parent=39 // pred_check
          %p442 = pneg %p147
        $region42: #{tpu_custom_call.1} parent=39 // pred_check_branch
          %444 = sbr.rel (%p442) target = $region44
        $region43: #{tpu_custom_call.1} parent=39 // pred_region
          %s445 = smul.u32 2, %s19
          %s447 = ssub.s32 64, 64
          %448 = vsyncadd %s438, %s447
          %s449 = smul.addr %s445, 32
          %s450 = scalar_lea.hbm %s5, %s449
          %s452 = sshll.u32 %s441, 4
          %s453 = int_to_ptr.vmem [resolvable:$true] %s452
          %455 = dma.vmem_to_hbm [thread:$0]  %s453, 64, %s450, %s438
        $region44: #{tpu_custom_call.1} parent=39 // pred_fallthru
          _
      $region40: #{tpu_custom_call.1} parent=5 // pred_fallthru
        _
      %p456 = scmp.le.s32.totalorder 2, %s14
      // Predicated region
      $region45: #{tpu_custom_call.1} parent=5 // pred_check
        %p457 = pneg %p456
      $region46: #{tpu_custom_call.1} parent=5 // pred_check_branch
        %459 = sbr.rel (%p457) target = $region48
      $region47: #{tpu_custom_call.1} parent=5 // pred_region
        %s460 = ssub.s32 %s14, 2
        // Predicated region
        $region49: #{tpu_custom_call.1} parent=47 // pred_check
          %p461 = pneg %p153
        $region50: #{tpu_custom_call.1} parent=47 // pred_check_branch
          %463 = sbr.rel (%p461) target = $region52
        $region51: #{tpu_custom_call.1} parent=47 // pred_region
          %s464 = sand.u32 %s138, 1
          %s465 = scalar_lea.sflag [#allocation3], %s464
          %s466 = sand.u32 %s138, 1
          %s467 = smul.addr %s466, 4
          %s468 = scalar_lea.vmem [#allocation2], %s467
          %469 = dma.done %s465, 64
        $region52: #{tpu_custom_call.1} parent=47 // pred_fallthru
          _
      $region48: #{tpu_custom_call.1} parent=5 // pred_fallthru
        _
    $region6: #{tpu_custom_call.1} parent=1 // loop_footer
      %s18 = sadd.s32 1, %s14
    $region7: #{tpu_custom_call.1} parent=1 // loop_footer_branch
      %13 = sbr.rel target = $region3
    $region8: #{tpu_custom_call.1} parent=1 // loop_exit
      _
    %470 = vsyncpa [#allocation3], 1
    %s471 = scalar_lea.sflag [#allocation3], 1
    %472 = vsyncpa %s471, 1

</llo_original>
